<compile_context>
chip_gen: v7x
topology: tpu7x:2x2x1
jax: 0.10.0
libtpu: 0.0.40
codegen_flags: <defaults>
</compile_context>

<pallas_src>
import jax
import jax.numpy as jnp
from jax.experimental import pallas as pl
from jax.experimental.pallas import tpu as pltpu

LANE_TILE = 128  # batch tile width on the lane axis


def _agru_kernel(xh_ref, hx_ref, attn_ref,
                 w_rn_ref, w_hn_ref, b_rn_ref, b_hn_ref,
                 o_ref):
    """One 128-wide batch tile of AGRUCell in transposed (feature-major) layout."""
    hidden = w_hn_ref.shape[0]

    # Fused MXU call:
    #   rows [0:H)   -> reset-gate preactivation  (i_r + h_r + bx_r + bh_r)
    #   rows [H:2H)  -> input-side new-gate preact (i_n + bx_n)
    gate = jnp.dot(w_rn_ref[...], xh_ref[...],
                   preferred_element_type=jnp.float32) + b_rn_ref[...]
    # Hidden-side new-gate preactivation (h_n + bh_n).
    h_n = jnp.dot(w_hn_ref[...], hx_ref[...],
                  preferred_element_type=jnp.float32) + b_hn_ref[...]

    reset_gate = jax.nn.sigmoid(gate[:hidden, :])
    new_gate = jnp.tanh(gate[hidden:, :] + reset_gate * h_n)

    hx = hx_ref[...].astype(jnp.float32)
    attn = attn_ref[...]                       # (1, TB) -> broadcasts over hidden
    hy = hx + attn * (new_gate - hx)
    o_ref[...] = hy.astype(o_ref.dtype)


@jax.jit
def agru_cell(x, hx, attn, wx, bx, wh, bh):
    """AGRUCell forward (matches PyTorch AGRUCell.forward bit-for-bit semantics).

    x:    (B, I)   hx: (B, H)   attn: (B,)
    wx:   (I, 3H)  x2h weight, transposed relative to PyTorch's (3H, I)
    bx:   (3H,)    x2h bias
    wh:   (H, 3H)  h2h weight, transposed
    bh:   (3H,)    h2h bias
    returns hy: (B, H)
    """
    B, I = x.shape
    H = hx.shape[1]
    f32 = jnp.float32

    # ---- wrapper-side weight/bias packing (constant-folded under jit) ------
    # Packed 3H layout is (u, r, n); the update-gate chunk is unused.
    wx_r, wx_n = wx[:, H:2 * H], wx[:, 2 * H:3 * H]
    wh_r, wh_n = wh[:, H:2 * H], wh[:, 2 * H:3 * H]
    # (I+H, 2H): column block 0 = reset gate over [x; hx], block 1 = i_n over x.
    w_rn = jnp.concatenate(
        [jnp.concatenate([wx_r, wh_r], axis=0),
         jnp.concatenate([wx_n, jnp.zeros((H, H), f32)], axis=0)],
        axis=1)
    w_rn_T = w_rn.T.astype(f32)                         # (2H, I+H)
    w_hn_T = wh_n.T.astype(f32)                         # (H, H)
    b_rn = jnp.concatenate([bx[H:2 * H] + bh[H:2 * H],
                            bx[2 * H:3 * H]]).reshape(2 * H, 1).astype(f32)
    b_hn = bh[2 * H:3 * H].reshape(H, 1).astype(f32)

    # ---- transposed, lane-dense activations --------------------------------
    xh_T = jnp.concatenate([x, hx], axis=1).T.astype(f32)   # (I+H, B)
    hx_T = hx.T.astype(f32)                                  # (H,   B)
    attn_T = attn.reshape(1, B).astype(f32)                  # (1,   B)

    # Pad batch to a multiple of the lane tile (zero attn in the pad -> hy=0).
    TB = LANE_TILE
    Bp = pl.cdiv(B, TB) * TB
    if Bp != B:
        pad = Bp - B
        xh_T = jnp.pad(xh_T, ((0, 0), (0, pad)))
        hx_T = jnp.pad(hx_T, ((0, 0), (0, pad)))
        attn_T = jnp.pad(attn_T, ((0, 0), (0, pad)))

    def batch_spec(rows):
        return pl.BlockSpec((rows, TB), lambda b: (0, b))

    def const_spec(shape):
        return pl.BlockSpec(shape, lambda b: (0, 0))

    hy_T = pl.pallas_call(
        _agru_kernel,
        out_shape=jax.ShapeDtypeStruct((H, Bp), hx.dtype),
        grid=(Bp // TB,),
        in_specs=[
            batch_spec(I + H),            # xh^T
            batch_spec(H),                # hx^T
            batch_spec(1),                # attn^T
            const_spec((2 * H, I + H)),   # fused reset/new x-side weights
            const_spec((H, H)),           # h-side new-gate weights
            const_spec((2 * H, 1)),       # packed biases (br | bx_n)
            const_spec((H, 1)),           # bh_n
        ],
        out_specs=batch_spec(H),
        input_output_aliases={1: 0},      # hy^T reuses the hx^T buffer
        compiler_params=pltpu.CompilerParams(
            dimension_semantics=("parallel",)),
    )(xh_T, hx_T, attn_T, w_rn_T, w_hn_T, b_rn, b_hn)

    return hy_T[:, :B].T


def agru_cell_ref(x, hx, attn, wx, bx, wh, bh):
    """Pure-JAX reference matching the PyTorch forward exactly."""
    gate_x = x @ wx + bx
    gate_h = hx @ wh + bh
    H = hx.shape[1]
    i_r, i_n = gate_x[:, H:2 * H], gate_x[:, 2 * H:3 * H]
    h_r, h_n = gate_h[:, H:2 * H], gate_h[:, 2 * H:3 * H]
    reset_gate = jax.nn.sigmoid(i_r + h_r)
    new_gate = jnp.tanh(i_n + reset_gate * h_n)
    return hx + attn.reshape(-1, 1) * (new_gate - hx)


def _make_inputs(batch, input_size, hidden_size, seed=0):
    key = jax.random.PRNGKey(seed)
    kx, kh, ka, kwx, kbx, kwh, kbh = jax.random.split(key, 7)
    x = jax.random.normal(kx, (batch, input_size), dtype=jnp.float32)
    hx = jax.random.normal(kh, (batch, hidden_size), dtype=jnp.float32)
    attn = jax.random.uniform(ka, (batch,), dtype=jnp.float32)
    # nn.Linear-style U(-1/sqrt(fan_in), +1/sqrt(fan_in)) init.
    kx2h = 1.0 / jnp.sqrt(input_size)
    kh2h = 1.0 / jnp.sqrt(hidden_size)
    wx = jax.random.uniform(kwx, (input_size, 3 * hidden_size),
                            minval=-kx2h, maxval=kx2h, dtype=jnp.float32)
    bx = jax.random.uniform(kbx, (3 * hidden_size,),
                            minval=-kx2h, maxval=kx2h, dtype=jnp.float32)
    wh = jax.random.uniform(kwh, (hidden_size, 3 * hidden_size),
                            minval=-kh2h, maxval=kh2h, dtype=jnp.float32)
    bh = jax.random.uniform(kbh, (3 * hidden_size,),
                            minval=-kh2h, maxval=kh2h, dtype=jnp.float32)
    return x, hx, attn, wx, bx, wh, bh


if __name__ == "__main__":
    INPUT_SIZE = 16
    HIDDEN_SIZE = 32

    # Case 1: lane-aligned batch (2 tiles of 128 -> exercises the parallel grid).
    args = _make_inputs(256, INPUT_SIZE, HIDDEN_SIZE, seed=0)
    hy = jax.block_until_ready(agru_cell(*args))
    hy_ref = agru_cell_ref(*args)
    assert hy.shape == (256, HIDDEN_SIZE)
    assert jnp.allclose(hy, hy_ref, atol=1e-5, rtol=1e-5), "mismatch vs reference (B=256)"

    # Case 2: small, non-lane-aligned batch (exercises the padding path).
    args_s = _make_inputs(8, INPUT_SIZE, HIDDEN_SIZE, seed=1)
    hy_s = jax.block_until_ready(agru_cell(*args_s))
    hy_s_ref = agru_cell_ref(*args_s)
    assert hy_s.shape == (8, HIDDEN_SIZE)
    assert jnp.allclose(hy_s, hy_s_ref, atol=1e-5, rtol=1e-5), "mismatch vs reference (B=8)"

    print("KERNEL_OK")
</pallas_src>

<mosaic_0001>
module attributes {stable_mosaic.version = 11 : i64} {
  func.func @_agru_kernel(%arg0: i32, %arg1: memref<48x128xf32, #tpu.memory_space<vmem>>, %arg2: memref<32x128xf32, #tpu.memory_space<vmem>>, %arg3: memref<1x128xf32, #tpu.memory_space<vmem>>, %arg4: memref<64x48xf32, #tpu.memory_space<vmem>>, %arg5: memref<32x32xf32, #tpu.memory_space<vmem>>, %arg6: memref<64x1xf32, #tpu.memory_space<vmem>>, %arg7: memref<32x1xf32, #tpu.memory_space<vmem>>, %arg8: memref<32x128xf32, #tpu.memory_space<vmem>>) attributes {dimension_semantics = [#tpu.dimension_semantics<parallel>], iteration_bounds = array<i64: 2>, scalar_prefetch = 0 : i64, scratch_operands = 0 : i64, tpu.core_type = #tpu.core_type<tc>, window_params = [{transform_indices = @transform_0, window_bounds = array<i64: 48, 128>}, {transform_indices = @transform_1, window_bounds = array<i64: 32, 128>}, {transform_indices = @transform_2, window_bounds = array<i64: 1, 128>}, {pipeline_mode = #tpu.pipeline_mode<synchronous>, transform_indices = @transform_3, window_bounds = array<i64: 64, 48>}, {pipeline_mode = #tpu.pipeline_mode<synchronous>, transform_indices = @transform_4, window_bounds = array<i64: 32, 32>}, {pipeline_mode = #tpu.pipeline_mode<synchronous>, transform_indices = @transform_5, window_bounds = array<i64: 64, 1>}, {pipeline_mode = #tpu.pipeline_mode<synchronous>, transform_indices = @transform_6, window_bounds = array<i64: 32, 1>}, {transform_indices = @transform_7, window_bounds = array<i64: 32, 128>}]} {
    %c0 = arith.constant 0 : index
    %c0_0 = arith.constant 0 : index
    %0 = vector.load %arg4[%c0, %c0_0] : memref<64x48xf32, #tpu.memory_space<vmem>>, vector<64x48xf32>
    %c0_1 = arith.constant 0 : index
    %c0_2 = arith.constant 0 : index
    %1 = vector.load %arg1[%c0_1, %c0_2] : memref<48x128xf32, #tpu.memory_space<vmem>>, vector<48x128xf32>
    %cst = arith.constant dense<0.000000e+00> : vector<64x128xf32>
    %2 = tpu.matmul %0, %1, %cst {dimension_numbers = #tpu.dot_dimension_numbers<[1], [0], [0], [1], [0, 0, 1, 1], [], []>} : vector<64x48xf32>, vector<48x128xf32>, vector<64x128xf32> -> vector<64x128xf32>
    %c0_3 = arith.constant 0 : index
    %c0_4 = arith.constant 0 : index
    %3 = vector.load %arg6[%c0_3, %c0_4] : memref<64x1xf32, #tpu.memory_space<vmem>>, vector<64x1xf32>
    %4 = vector.broadcast %3 : vector<64x1xf32> to vector<64x128xf32>
    %5 = arith.addf %2, %4 : vector<64x128xf32>
    %c0_5 = arith.constant 0 : index
    %c0_6 = arith.constant 0 : index
    %6 = vector.load %arg5[%c0_5, %c0_6] : memref<32x32xf32, #tpu.memory_space<vmem>>, vector<32x32xf32>
    %c0_7 = arith.constant 0 : index
    %c0_8 = arith.constant 0 : index
    %7 = vector.load %arg2[%c0_7, %c0_8] : memref<32x128xf32, #tpu.memory_space<vmem>>, vector<32x128xf32>
    %cst_9 = arith.constant dense<0.000000e+00> : vector<32x128xf32>
    %8 = tpu.matmul %6, %7, %cst_9 {dimension_numbers = #tpu.dot_dimension_numbers<[1], [0], [0], [1], [0, 0, 1, 1], [], []>} : vector<32x32xf32>, vector<32x128xf32>, vector<32x128xf32> -> vector<32x128xf32>
    %c0_10 = arith.constant 0 : index
    %c0_11 = arith.constant 0 : index
    %9 = vector.load %arg7[%c0_10, %c0_11] : memref<32x1xf32, #tpu.memory_space<vmem>>, vector<32x1xf32>
    %10 = vector.broadcast %9 : vector<32x1xf32> to vector<32x128xf32>
    %11 = arith.addf %8, %10 : vector<32x128xf32>
    %12 = vector.extract_strided_slice %5 {offsets = [0, 0], sizes = [32, 128], strides = [1, 1]} : vector<64x128xf32> to vector<32x128xf32>
    %13 = arith.negf %12 : vector<32x128xf32>
    %14 = math.exp %13 : vector<32x128xf32>
    %cst_12 = arith.constant 1.000000e+00 : f32
    %15 = vector.broadcast %cst_12 : f32 to vector<32x128xf32>
    %16 = arith.addf %15, %14 : vector<32x128xf32>
    %17 = arith.divf %15, %16 : vector<32x128xf32>
    %18 = vector.extract_strided_slice %5 {offsets = [32, 0], sizes = [32, 128], strides = [1, 1]} : vector<64x128xf32> to vector<32x128xf32>
    %19 = arith.mulf %17, %11 : vector<32x128xf32>
    %20 = arith.addf %18, %19 : vector<32x128xf32>
    %21 = math.tanh %20 : vector<32x128xf32>
    %c0_13 = arith.constant 0 : index
    %c0_14 = arith.constant 0 : index
    %22 = vector.load %arg2[%c0_13, %c0_14] : memref<32x128xf32, #tpu.memory_space<vmem>>, vector<32x128xf32>
    %c0_15 = arith.constant 0 : index
    %c0_16 = arith.constant 0 : index
    %23 = vector.load %arg3[%c0_15, %c0_16] : memref<1x128xf32, #tpu.memory_space<vmem>>, vector<1x128xf32>
    %24 = arith.subf %21, %22 : vector<32x128xf32>
    %25 = vector.broadcast %23 : vector<1x128xf32> to vector<32x128xf32>
    %26 = arith.mulf %25, %24 : vector<32x128xf32>
    %27 = arith.addf %22, %26 : vector<32x128xf32>
    %c0_17 = arith.constant 0 : index
    %c0_18 = arith.constant 0 : index
    %28 = vector.load %arg8[%c0_17, %c0_18] : memref<32x128xf32, #tpu.memory_space<vmem>>, vector<32x128xf32>
    tpu.vector_store %arg8[%c0_17, %c0_18], %27 {strides = array<i32>} : memref<32x128xf32, #tpu.memory_space<vmem>>, vector<32x128xf32>,
    return
  }
  func.func @transform_0(%arg0: i32) -> (i32, i32) {
    %c0_i32 = arith.constant 0 : i32
    %c0_i32_0 = arith.constant 0 : i32
    return %c0_i32, %arg0 : i32, i32
  }
  func.func @transform_1(%arg0: i32) -> (i32, i32) {
    %c0_i32 = arith.constant 0 : i32
    %c0_i32_0 = arith.constant 0 : i32
    return %c0_i32, %arg0 : i32, i32
  }
  func.func @transform_2(%arg0: i32) -> (i32, i32) {
    %c0_i32 = arith.constant 0 : i32
    %c0_i32_0 = arith.constant 0 : i32
    return %c0_i32, %arg0 : i32, i32
  }
  func.func @transform_3(%arg0: i32) -> (i32, i32) {
    %c0_i32 = arith.constant 0 : i32
    %c0_i32_0 = arith.constant 0 : i32
    %c0_i32_1 = arith.constant 0 : i32
    return %c0_i32, %c0_i32_0 : i32, i32
  }
  func.func @transform_4(%arg0: i32) -> (i32, i32) {
    %c0_i32 = arith.constant 0 : i32
    %c0_i32_0 = arith.constant 0 : i32
    %c0_i32_1 = arith.constant 0 : i32
    return %c0_i32, %c0_i32_0 : i32, i32
  }
  func.func @transform_5(%arg0: i32) -> (i32, i32) {
    %c0_i32 = arith.constant 0 : i32
    %c0_i32_0 = arith.constant 0 : i32
    %c0_i32_1 = arith.constant 0 : i32
    return %c0_i32, %c0_i32_0 : i32, i32
  }
  func.func @transform_6(%arg0: i32) -> (i32, i32) {
    %c0_i32 = arith.constant 0 : i32
    %c0_i32_0 = arith.constant 0 : i32
    %c0_i32_1 = arith.constant 0 : i32
    return %c0_i32, %c0_i32_0 : i32, i32
  }
  func.func @transform_7(%arg0: i32) -> (i32, i32) {
    %c0_i32 = arith.constant 0 : i32
    %c0_i32_0 = arith.constant 0 : i32
    return %c0_i32, %arg0 : i32, i32
  }
}

</mosaic_0001>

<llo_original>
// kernel: agru_cell.1
$region0: #{agru_cell.1}
  #allocation0 [shape = 'u32[]', space=smem, size = 0x4, offset = 0x4, fixed_abs, tag = 'smem constant byte address 0x4 - core index']
  #allocation1 [shape = 'u32[144,128]{1,0:T(1,128)}', space=vmem, size = 0x12000, scoped, tag = 'internal scratch']
  %s0 = inlined_call_operand.vmem [shape: f32[48,256], index: 0, kind: input, shape index: {}]
  %s1 = inlined_call_operand.vmem [shape: f32[32,256], index: 1, kind: input, shape index: {}, may-alias: {1,7}]
  %s2 = inlined_call_operand.vmem [shape: f32[1,256], index: 2, kind: input, shape index: {}]
  %s3 = inlined_call_operand.vmem [shape: f32[64,48], index: 3, kind: input, shape index: {}]
  %s4 = inlined_call_operand.vmem [shape: f32[32,32], index: 4, kind: input, shape index: {}]
  %s5 = inlined_call_operand.vmem [shape: f32[64,1], index: 5, kind: input, shape index: {}]
  %s6 = inlined_call_operand.vmem [shape: f32[32,1], index: 6, kind: input, shape index: {}]
  %s7 = inlined_call_operand.vmem [shape: f32[32,256], index: 7, kind: output, shape index: {}, may-alias: {1,7}]
  %s8 = sld [smem:[#allocation0]]
  $region171: #{agru_cell.1} parent=0
    _
  %s10 = ssub.s32 1, %s8
  %s11 = scalar_select 0, %s10, %s8
  $region1: #{agru_cell.1} parent=0
    #allocation2 [shape = 'u8[49152]{0}', space=vmem, size = 0xc000, scoped, tag = 'input window, operand 0']
    #allocation3 [shape = 'u8[32768]{0}', space=vmem, size = 0x8000, scoped, tag = 'input window, operand 1']
    #allocation4 [shape = 'u8[32768]{0}', space=vmem, size = 0x8000, scoped, tag = 'output window, operand 0']
    loop: start=0, step=1, limit=4
    $region2: #{agru_cell.1} parent=1 // loop_pre_header
      _
    $region3: #{agru_cell.1} parent=1 // loop_header
      %s13 = sphi 0, %s17
      %p14 = scmp.ge.s32.totalorder %s13, 4
      %s23 = sphi 0, %s25
      %s26 = sphi 0, %s23
      %s27 = sphi 0, %s26
      %s43 = sphi 0, %s27
      %s49 = sphi 0, %s51
      %s52 = sphi 0, %s49
      %s53 = sphi 0, %s52
      %s69 = sphi 0, %s53
      %s75 = sphi 0, %s77
      %s78 = sphi 0, %s75
      %s79 = sphi 0, %s78
      %s95 = sphi 0, %s79
      %s99 = sphi 0, %s99
      %s101 = sphi 0, %s99
      %s102 = sphi 0, %s101
      %s116 = sphi 0, %s102
      %s120 = sphi 0, %s120
      %s122 = sphi 0, %s120
      %s123 = sphi 0, %s122
      %s137 = sphi 0, %s123
      %s141 = sphi 0, %s141
      %s143 = sphi 0, %s141
      %s144 = sphi 0, %s143
      %s158 = sphi 0, %s144
      %s162 = sphi 0, %s162
      %s164 = sphi 0, %s162
      %s165 = sphi 0, %s164
      %s179 = sphi 0, %s165
      %s185 = sphi 0, %s187
      %s188 = sphi 0, %s185
      %s189 = sphi 0, %s188
      %s205 = sphi 0, %s189
    $region4: #{agru_cell.1} parent=1 // loop_header_branch
      %16 = sbr.rel (%p14) target = $region8
    $region5: #{agru_cell.1} parent=1 // loop_body
      %s18 = ssub.s32 %s13, 1
      %s19 = ssub.s32 %s13, 2
      %s20 = sadd.s32 %s13, 1
      %s21 = ssub.s32 %s13, %s20
      %p22 = scmp.eq.s32.totalorder %s21, 0
      %s24 = sadd.s32 %s23, 1
      %s25 = scalar_select %p22, %s23, %s24
      %p28 = pneg %p22
      %p29 = scmp.eq.s32.totalorder %s13, 1
      %p30 = por %p28, %p29
      %p31 = scmp.ne.s32.totalorder %s23, %s26
      %p32 = scmp.eq.s32.totalorder %s13, 0
      %p33 = por %p31, %p32
      %p34 = scmp.ne.s32.totalorder %s23, %s26
      %p35 = scmp.eq.s32.totalorder %s18, 1
      %p36 = por %p34, %p35
      %p37 = scmp.ne.s32.totalorder %s26, %s27
      %p38 = scmp.eq.s32.totalorder %s18, 0
      %p39 = por %p37, %p38
      %p40 = scmp.ne.s32.totalorder %s26, %s27
      %p41 = scmp.eq.s32.totalorder %s19, 1
      %p42 = por %p40, %p41
      %p44 = scmp.ne.s32.totalorder %s27, %s43
      %p45 = scmp.eq.s32.totalorder %s19, 0
      %p46 = por %p44, %p45
      %s47 = ssub.s32 %s13, %s20
      %p48 = scmp.eq.s32.totalorder %s47, 0
      %s50 = sadd.s32 %s49, 1
      %s51 = scalar_select %p48, %s49, %s50
      %p54 = pneg %p48
      %p55 = scmp.eq.s32.totalorder %s13, 1
      %p56 = por %p54, %p55
      %p57 = scmp.ne.s32.totalorder %s49, %s52
      %p58 = scmp.eq.s32.totalorder %s13, 0
      %p59 = por %p57, %p58
      %p60 = scmp.ne.s32.totalorder %s49, %s52
      %p61 = scmp.eq.s32.totalorder %s18, 1
      %p62 = por %p60, %p61
      %p63 = scmp.ne.s32.totalorder %s52, %s53
      %p64 = scmp.eq.s32.totalorder %s18, 0
      %p65 = por %p63, %p64
      %p66 = scmp.ne.s32.totalorder %s52, %s53
      %p67 = scmp.eq.s32.totalorder %s19, 1
      %p68 = por %p66, %p67
      %p70 = scmp.ne.s32.totalorder %s53, %s69
      %p71 = scmp.eq.s32.totalorder %s19, 0
      %p72 = por %p70, %p71
      %s73 = ssub.s32 %s13, %s20
      %p74 = scmp.eq.s32.totalorder %s73, 0
      %s76 = sadd.s32 %s75, 1
      %s77 = scalar_select %p74, %s75, %s76
      %p80 = pneg %p74
      %p81 = scmp.eq.s32.totalorder %s13, 1
      %p82 = por %p80, %p81
      %p83 = scmp.ne.s32.totalorder %s75, %s78
      %p84 = scmp.eq.s32.totalorder %s13, 0
      %p85 = por %p83, %p84
      %p86 = scmp.ne.s32.totalorder %s75, %s78
      %p87 = scmp.eq.s32.totalorder %s18, 1
      %p88 = por %p86, %p87
      %p89 = scmp.ne.s32.totalorder %s78, %s79
      %p90 = scmp.eq.s32.totalorder %s18, 0
      %p91 = por %p89, %p90
      %p92 = scmp.ne.s32.totalorder %s78, %s79
      %p93 = scmp.eq.s32.totalorder %s19, 1
      %p94 = por %p92, %p93
      %p96 = scmp.ne.s32.totalorder %s79, %s95
      %p97 = scmp.eq.s32.totalorder %s19, 0
      %p98 = por %p96, %p97
      %s100 = sadd.s32 %s99, 1
      %p103 = scmp.eq.s32.totalorder %s13, 1
      %p104 = scmp.ne.s32.totalorder %s99, %s101
      %p105 = scmp.eq.s32.totalorder %s13, 0
      %p106 = por %p104, %p105
      %p107 = scmp.ne.s32.totalorder %s99, %s101
      %p108 = scmp.eq.s32.totalorder %s18, 1
      %p109 = por %p107, %p108
      %p110 = scmp.ne.s32.totalorder %s101, %s102
      %p111 = scmp.eq.s32.totalorder %s18, 0
      %p112 = por %p110, %p111
      %p113 = scmp.ne.s32.totalorder %s101, %s102
      %p114 = scmp.eq.s32.totalorder %s19, 1
      %p115 = por %p113, %p114
      %p117 = scmp.ne.s32.totalorder %s102, %s116
      %p118 = scmp.eq.s32.totalorder %s19, 0
      %p119 = por %p117, %p118
      %s121 = sadd.s32 %s120, 1
      %p124 = scmp.eq.s32.totalorder %s13, 1
      %p125 = scmp.ne.s32.totalorder %s120, %s122
      %p126 = scmp.eq.s32.totalorder %s13, 0
      %p127 = por %p125, %p126
      %p128 = scmp.ne.s32.totalorder %s120, %s122
      %p129 = scmp.eq.s32.totalorder %s18, 1
      %p130 = por %p128, %p129
      %p131 = scmp.ne.s32.totalorder %s122, %s123
      %p132 = scmp.eq.s32.totalorder %s18, 0
      %p133 = por %p131, %p132
      %p134 = scmp.ne.s32.totalorder %s122, %s123
      %p135 = scmp.eq.s32.totalorder %s19, 1
      %p136 = por %p134, %p135
      %p138 = scmp.ne.s32.totalorder %s123, %s137
      %p139 = scmp.eq.s32.totalorder %s19, 0
      %p140 = por %p138, %p139
      %s142 = sadd.s32 %s141, 1
      %p145 = scmp.eq.s32.totalorder %s13, 1
      %p146 = scmp.ne.s32.totalorder %s141, %s143
      %p147 = scmp.eq.s32.totalorder %s13, 0
      %p148 = por %p146, %p147
      %p149 = scmp.ne.s32.totalorder %s141, %s143
      %p150 = scmp.eq.s32.totalorder %s18, 1
      %p151 = por %p149, %p150
      %p152 = scmp.ne.s32.totalorder %s143, %s144
      %p153 = scmp.eq.s32.totalorder %s18, 0
      %p154 = por %p152, %p153
      %p155 = scmp.ne.s32.totalorder %s143, %s144
      %p156 = scmp.eq.s32.totalorder %s19, 1
      %p157 = por %p155, %p156
      %p159 = scmp.ne.s32.totalorder %s144, %s158
      %p160 = scmp.eq.s32.totalorder %s19, 0
      %p161 = por %p159, %p160
      %s163 = sadd.s32 %s162, 1
      %p166 = scmp.eq.s32.totalorder %s13, 1
      %p167 = scmp.ne.s32.totalorder %s162, %s164
      %p168 = scmp.eq.s32.totalorder %s13, 0
      %p169 = por %p167, %p168
      %p170 = scmp.ne.s32.totalorder %s162, %s164
      %p171 = scmp.eq.s32.totalorder %s18, 1
      %p172 = por %p170, %p171
      %p173 = scmp.ne.s32.totalorder %s164, %s165
      %p174 = scmp.eq.s32.totalorder %s18, 0
      %p175 = por %p173, %p174
      %p176 = scmp.ne.s32.totalorder %s164, %s165
      %p177 = scmp.eq.s32.totalorder %s19, 1
      %p178 = por %p176, %p177
      %p180 = scmp.ne.s32.totalorder %s165, %s179
      %p181 = scmp.eq.s32.totalorder %s19, 0
      %p182 = por %p180, %p181
      %s183 = ssub.s32 %s13, %s20
      %p184 = scmp.eq.s32.totalorder %s183, 0
      %s186 = sadd.s32 %s185, 1
      %s187 = scalar_select %p184, %s185, %s186
      %p190 = pneg %p184
      %p191 = scmp.eq.s32.totalorder %s13, 1
      %p192 = por %p190, %p191
      %p193 = scmp.ne.s32.totalorder %s185, %s188
      %p194 = scmp.eq.s32.totalorder %s13, 0
      %p195 = por %p193, %p194
      %p196 = scmp.ne.s32.totalorder %s185, %s188
      %p197 = scmp.eq.s32.totalorder %s18, 1
      %p198 = por %p196, %p197
      %p199 = scmp.ne.s32.totalorder %s188, %s189
      %p200 = scmp.eq.s32.totalorder %s18, 0
      %p201 = por %p199, %p200
      %p202 = scmp.ne.s32.totalorder %s188, %s189
      %p203 = scmp.eq.s32.totalorder %s19, 1
      %p204 = por %p202, %p203
      %p206 = scmp.ne.s32.totalorder %s189, %s205
      %p207 = scmp.eq.s32.totalorder %s19, 0
      %p208 = por %p206, %p207
      %p209 = scmp.le.s32.totalorder 1, %s13
      %p210 = scmp.lt.s32.totalorder %s13, 3
      %p211 = pnand %p209, %p210
      %p212 = pneg %p211
      // Predicated region
      $region9: #{agru_cell.1} parent=5 // pred_check
        _
      $region10: #{agru_cell.1} parent=5 // pred_check_branch
        %214 = sbr.rel (%p211) target = $region12
      $region11: #{agru_cell.1} parent=5 // pred_region
        %s215 = ssub.s32 %s13, 1
        // Predicated region
        $region13: #{agru_cell.1} parent=11 // pred_check
          %p216 = pneg %p112
        $region14: #{agru_cell.1} parent=11 // pred_check_branch
          %218 = sbr.rel (%p216) target = $region16
        $region15: #{agru_cell.1} parent=11 // pred_region
          _
        $region16: #{agru_cell.1} parent=11 // pred_fallthru
          _
        // Predicated region
        $region17: #{agru_cell.1} parent=11 // pred_check
          %p219 = pneg %p133
        $region18: #{agru_cell.1} parent=11 // pred_check_branch
          %221 = sbr.rel (%p219) target = $region20
        $region19: #{agru_cell.1} parent=11 // pred_region
          _
        $region20: #{agru_cell.1} parent=11 // pred_fallthru
          _
        // Predicated region
        $region21: #{agru_cell.1} parent=11 // pred_check
          %p222 = pneg %p154
        $region22: #{agru_cell.1} parent=11 // pred_check_branch
          %224 = sbr.rel (%p222) target = $region24
        $region23: #{agru_cell.1} parent=11 // pred_region
          _
        $region24: #{agru_cell.1} parent=11 // pred_fallthru
          _
        // Predicated region
        $region25: #{agru_cell.1} parent=11 // pred_check
          %p225 = pneg %p175
        $region26: #{agru_cell.1} parent=11 // pred_check_branch
          %227 = sbr.rel (%p225) target = $region28
        $region27: #{agru_cell.1} parent=11 // pred_region
          _
        $region28: #{agru_cell.1} parent=11 // pred_fallthru
          _
      $region12: #{agru_cell.1} parent=5 // pred_fallthru
        _
      %p228 = scmp.lt.s32.totalorder %s13, 2
      // Predicated region
      $region29: #{agru_cell.1} parent=5 // pred_check
        %p229 = pneg %p228
      $region30: #{agru_cell.1} parent=5 // pred_check_branch
        %231 = sbr.rel (%p229) target = $region32
      $region31: #{agru_cell.1} parent=5 // pred_region
        // Predicated region
        $region33: #{agru_cell.1} parent=31 // pred_check
          %p232 = pneg %p33
        $region34: #{agru_cell.1} parent=31 // pred_check_branch
          %234 = sbr.rel (%p232) target = $region36
        $region35: #{agru_cell.1} parent=31 // pred_region
          %s235 = sand.u32 %s23, 1
          %s236 = sand.u32 %s23, 1
          %s237 = smul.addr %s236, 48
          %s238 = scalar_lea.vmem [#allocation2], %s237
          %s239 = smul.addr %s13, 8
          %s240 = scalar_lea.vmem %s0, %s239
          // Predicated region
          $region37: #{agru_cell.1} parent=35 // pred_check
            _
          $region38: #{agru_cell.1} parent=35 // pred_check_branch
            %242 = sbr.rel (0) target = $region40
          $region39: #{agru_cell.1} parent=35 // pred_region
            // Predicated region
            $region41: #{agru_cell.1} parent=39 // pred_check
              _
            $region42: #{agru_cell.1} parent=39 // pred_check_branch
              %244 = sbr.rel (0) target = $region44
            $region43: #{agru_cell.1} parent=39 // pred_region
              // Predicated region
              $region56: #{agru_cell.1} parent=43 // pred_check
                _
              $region57: #{agru_cell.1} parent=43 // pred_check_branch
                %269 = sbr.rel (0) target = $region59
              $region58: #{agru_cell.1} parent=43 // pred_region
                loop: start=0, step=1, limit=1
                $region60: #{agru_cell.1} parent=58 // loop_pre_header
                  _
                $region61: #{agru_cell.1} parent=58 // loop_header
                  %s271 = sphi 0, %s275
                  %p272 = scmp.ge.s32.totalorder %s271, 1
                  %s276 = sphi %s240, %s240
                  %s277 = sphi %s238, %s238
                $region62: #{agru_cell.1} parent=58 // loop_header_branch
                  %274 = sbr.rel (%p272) target = $region66
                $region63: #{agru_cell.1} parent=58 // loop_body
                  %v278 = vld [vmem:[%s276] sm:$0xff]
                  %279 = vst [vmem:[%s277] sm:$0xff] %v278
                  %v280 = vld [vmem:[%s276 + $0x10] sm:$0xff]
                  %281 = vst [vmem:[%s277 + $0x8] sm:$0xff] %v280
                  %v282 = vld [vmem:[%s276 + $0x20] sm:$0xff]
                  %283 = vst [vmem:[%s277 + $0x10] sm:$0xff] %v282
                  %v284 = vld [vmem:[%s276 + $0x30] sm:$0xff]
                  %285 = vst [vmem:[%s277 + $0x18] sm:$0xff] %v284
                  %v286 = vld [vmem:[%s276 + $0x40] sm:$0xff]
                  %287 = vst [vmem:[%s277 + $0x20] sm:$0xff] %v286
                  %v288 = vld [vmem:[%s276 + $0x50] sm:$0xff]
                  %289 = vst [vmem:[%s277 + $0x28] sm:$0xff] %v288
                $region64: #{agru_cell.1} parent=58 // loop_footer
                  %s275 = sadd.s32 1, %s271
                $region65: #{agru_cell.1} parent=58 // loop_footer_branch
                  %270 = sbr.rel target = $region61
                $region66: #{agru_cell.1} parent=58 // loop_exit
                  _
              $region59: #{agru_cell.1} parent=43 // pred_fallthru
                _
              // Predicated region
              $region67: #{agru_cell.1} parent=43 // pred_check
                _
              $region68: #{agru_cell.1} parent=43 // pred_check_branch
                %291 = sbr.rel target = $region70
              $region69: #{agru_cell.1} parent=43 // pred_region
                _
              $region70: #{agru_cell.1} parent=43 // pred_fallthru
                _
            $region44: #{agru_cell.1} parent=39 // pred_fallthru
              _
            // Predicated region
            $region45: #{agru_cell.1} parent=39 // pred_check
              _
            $region46: #{agru_cell.1} parent=39 // pred_check_branch
              %246 = sbr.rel target = $region48
            $region47: #{agru_cell.1} parent=39 // pred_region
              loop: start=0, step=1, limit=1
              $region49: #{agru_cell.1} parent=47 // loop_pre_header
                _
              $region50: #{agru_cell.1} parent=47 // loop_header
                %s249 = sphi 0, %s253
                %p250 = scmp.ge.s32.totalorder %s249, 1
                %s254 = sphi %s240, %s240
                %s255 = sphi %s238, %s238
              $region51: #{agru_cell.1} parent=47 // loop_header_branch
                %252 = sbr.rel (%p250) target = $region55
              $region52: #{agru_cell.1} parent=47 // loop_body
                %v256 = vld [vmem:[%s254] sm:$0xff]
                %257 = vst [vmem:[%s255] sm:$0xff] %v256
                %v258 = vld [vmem:[%s254 + $0x10] sm:$0xff]
                %259 = vst [vmem:[%s255 + $0x8] sm:$0xff] %v258
                %v260 = vld [vmem:[%s254 + $0x20] sm:$0xff]
                %261 = vst [vmem:[%s255 + $0x10] sm:$0xff] %v260
                %v262 = vld [vmem:[%s254 + $0x30] sm:$0xff]
                %263 = vst [vmem:[%s255 + $0x18] sm:$0xff] %v262
                %v264 = vld [vmem:[%s254 + $0x40] sm:$0xff]
                %265 = vst [vmem:[%s255 + $0x20] sm:$0xff] %v264
                %v266 = vld [vmem:[%s254 + $0x50] sm:$0xff]
                %267 = vst [vmem:[%s255 + $0x28] sm:$0xff] %v266
              $region53: #{agru_cell.1} parent=47 // loop_footer
                %s253 = sadd.s32 1, %s249
              $region54: #{agru_cell.1} parent=47 // loop_footer_branch
                %248 = sbr.rel target = $region50
              $region55: #{agru_cell.1} parent=47 // loop_exit
                _
            $region48: #{agru_cell.1} parent=39 // pred_fallthru
              _
          $region40: #{agru_cell.1} parent=35 // pred_fallthru
            _
          %292 = vnop
        $region36: #{agru_cell.1} parent=31 // pred_fallthru
          _
        // Predicated region
        $region71: #{agru_cell.1} parent=31 // pred_check
          %p293 = pneg %p59
        $region72: #{agru_cell.1} parent=31 // pred_check_branch
          %295 = sbr.rel (%p293) target = $region74
        $region73: #{agru_cell.1} parent=31 // pred_region
          %s296 = sand.u32 %s49, 1
          %s297 = sand.u32 %s49, 1
          %s298 = smul.addr %s297, 32
          %s299 = scalar_lea.vmem [#allocation3], %s298
          %s300 = smul.addr %s13, 8
          %s301 = scalar_lea.vmem %s1, %s300
          // Predicated region
          $region75: #{agru_cell.1} parent=73 // pred_check
            _
          $region76: #{agru_cell.1} parent=73 // pred_check_branch
            %303 = sbr.rel (0) target = $region78
          $region77: #{agru_cell.1} parent=73 // pred_region
            // Predicated region
            $region79: #{agru_cell.1} parent=77 // pred_check
              _
            $region80: #{agru_cell.1} parent=77 // pred_check_branch
              %305 = sbr.rel (0) target = $region82
            $region81: #{agru_cell.1} parent=77 // pred_region
              // Predicated region
              $region94: #{agru_cell.1} parent=81 // pred_check
                _
              $region95: #{agru_cell.1} parent=81 // pred_check_branch
                %326 = sbr.rel (0) target = $region97
              $region96: #{agru_cell.1} parent=81 // pred_region
                loop: start=0, step=1, limit=1
                $region98: #{agru_cell.1} parent=96 // loop_pre_header
                  _
                $region99: #{agru_cell.1} parent=96 // loop_header
                  %s328 = sphi 0, %s332
                  %p329 = scmp.ge.s32.totalorder %s328, 1
                  %s333 = sphi %s301, %s301
                  %s334 = sphi %s299, %s299
                $region100: #{agru_cell.1} parent=96 // loop_header_branch
                  %331 = sbr.rel (%p329) target = $region104
                $region101: #{agru_cell.1} parent=96 // loop_body
                  %v335 = vld [vmem:[%s333] sm:$0xff]
                  %336 = vst [vmem:[%s334] sm:$0xff] %v335
                  %v337 = vld [vmem:[%s333 + $0x10] sm:$0xff]
                  %338 = vst [vmem:[%s334 + $0x8] sm:$0xff] %v337
                  %v339 = vld [vmem:[%s333 + $0x20] sm:$0xff]
                  %340 = vst [vmem:[%s334 + $0x10] sm:$0xff] %v339
                  %v341 = vld [vmem:[%s333 + $0x30] sm:$0xff]
                  %342 = vst [vmem:[%s334 + $0x18] sm:$0xff] %v341
                $region102: #{agru_cell.1} parent=96 // loop_footer
                  %s332 = sadd.s32 1, %s328
                $region103: #{agru_cell.1} parent=96 // loop_footer_branch
                  %327 = sbr.rel target = $region99
                $region104: #{agru_cell.1} parent=96 // loop_exit
                  _
              $region97: #{agru_cell.1} parent=81 // pred_fallthru
                _
              // Predicated region
              $region105: #{agru_cell.1} parent=81 // pred_check
                _
              $region106: #{agru_cell.1} parent=81 // pred_check_branch
                %344 = sbr.rel target = $region108
              $region107: #{agru_cell.1} parent=81 // pred_region
                _
              $region108: #{agru_cell.1} parent=81 // pred_fallthru
                _
            $region82: #{agru_cell.1} parent=77 // pred_fallthru
              _
            // Predicated region
            $region83: #{agru_cell.1} parent=77 // pred_check
              _
            $region84: #{agru_cell.1} parent=77 // pred_check_branch
              %307 = sbr.rel target = $region86
            $region85: #{agru_cell.1} parent=77 // pred_region
              loop: start=0, step=1, limit=1
              $region87: #{agru_cell.1} parent=85 // loop_pre_header
                _
              $region88: #{agru_cell.1} parent=85 // loop_header
                %s310 = sphi 0, %s314
                %p311 = scmp.ge.s32.totalorder %s310, 1
                %s315 = sphi %s301, %s301
                %s316 = sphi %s299, %s299
              $region89: #{agru_cell.1} parent=85 // loop_header_branch
                %313 = sbr.rel (%p311) target = $region93
              $region90: #{agru_cell.1} parent=85 // loop_body
                %v317 = vld [vmem:[%s315] sm:$0xff]
                %318 = vst [vmem:[%s316] sm:$0xff] %v317
                %v319 = vld [vmem:[%s315 + $0x10] sm:$0xff]
                %320 = vst [vmem:[%s316 + $0x8] sm:$0xff] %v319
                %v321 = vld [vmem:[%s315 + $0x20] sm:$0xff]
                %322 = vst [vmem:[%s316 + $0x10] sm:$0xff] %v321
                %v323 = vld [vmem:[%s315 + $0x30] sm:$0xff]
                %324 = vst [vmem:[%s316 + $0x18] sm:$0xff] %v323
              $region91: #{agru_cell.1} parent=85 // loop_footer
                %s314 = sadd.s32 1, %s310
              $region92: #{agru_cell.1} parent=85 // loop_footer_branch
                %309 = sbr.rel target = $region88
              $region93: #{agru_cell.1} parent=85 // loop_exit
                _
            $region86: #{agru_cell.1} parent=77 // pred_fallthru
              _
          $region78: #{agru_cell.1} parent=73 // pred_fallthru
            _
          %345 = vnop
        $region74: #{agru_cell.1} parent=31 // pred_fallthru
          _
        // Predicated region
        $region109: #{agru_cell.1} parent=31 // pred_check
          %p346 = pneg %p85
        $region110: #{agru_cell.1} parent=31 // pred_check_branch
          %348 = sbr.rel (%p346) target = $region112
        $region111: #{agru_cell.1} parent=31 // pred_region
          %p349 = scmp.lt.s32.totalorder %s13, 1
          %s350 = scalar_select %p349, %s13, 1
          %s351 = scalar_lea.vmem %s2, %s350
        $region112: #{agru_cell.1} parent=31 // pred_fallthru
          _
      $region32: #{agru_cell.1} parent=5 // pred_fallthru
        _
      %p352 = scmp.le.s32.totalorder 1, %s13
      %p353 = scmp.lt.s32.totalorder %s13, 3
      %p354 = pnand %p352, %p353
      %p355 = pneg %p354
      // Predicated region
      $region113: #{agru_cell.1} parent=5 // pred_check
        _
      $region114: #{agru_cell.1} parent=5 // pred_check_branch
        %357 = sbr.rel (%p354) target = $region116
      $region115: #{agru_cell.1} parent=5 // pred_region
        %s358 = ssub.s32 %s13, 1
        %s359 = sand.u32 %s26, 1
        %s360 = sand.u32 %s26, 1
        %s361 = smul.addr %s360, 48
        %s362 = scalar_lea.vmem [#allocation2], %s361
        // Predicated region
        $region117: #{agru_cell.1} parent=115 // pred_check
          %p363 = pneg %p39
        $region118: #{agru_cell.1} parent=115 // pred_check_branch
          %365 = sbr.rel (%p363) target = $region120
        $region119: #{agru_cell.1} parent=115 // pred_region
          _
        $region120: #{agru_cell.1} parent=115 // pred_fallthru
          _
        %s366 = sand.u32 %s52, 1
        %s367 = sand.u32 %s52, 1
        %s368 = smul.addr %s367, 32
        %s369 = scalar_lea.vmem [#allocation3], %s368
        // Predicated region
        $region121: #{agru_cell.1} parent=115 // pred_check
          %p370 = pneg %p65
        $region122: #{agru_cell.1} parent=115 // pred_check_branch
          %372 = sbr.rel (%p370) target = $region124
        $region123: #{agru_cell.1} parent=115 // pred_region
          _
        $region124: #{agru_cell.1} parent=115 // pred_fallthru
          _
        %s373 = sand.u32 %s26, 1
        %s374 = sand.u32 %s26, 1
        %s375 = smul.addr %s374, 48
        %s376 = scalar_lea.vmem [#allocation2], %s375
        %p377 = pneg %p39
        %p378 = pneg %p36
        %s379 = sand.u32 %s52, 1
        %s380 = sand.u32 %s52, 1
        %s381 = smul.addr %s380, 32
        %s382 = scalar_lea.vmem [#allocation3], %s381
        %p383 = pneg %p65
        %p384 = pneg %p62
        %p385 = scmp.lt.s32.totalorder %s18, 1
        %s386 = scalar_select %p385, %s18, 1
        %s387 = scalar_lea.vmem %s2, %s386
        %p388 = pneg %p91
        %p389 = pneg %p88
        %p390 = pneg %p112
        %p391 = pneg %p109
        %p392 = pneg %p133
        %p393 = pneg %p130
        %p394 = pneg %p154
        %p395 = pneg %p151
        %p396 = pneg %p175
        %p397 = pneg %p172
        %p398 = pneg %p201
        %p399 = pneg %p198
        %s400 = sand.u32 %s188, 1
        %s401 = sand.u32 %s188, 1
        %s402 = smul.addr %s401, 32
        %s403 = scalar_lea.vmem [#allocation4], %s402
        %p404 = scmp.lt.s32.totalorder %s18, 1
        %s405 = scalar_select %p404, %s18, 1
        %s406 = scalar_lea.vmem %s2, %s405
        %v407 = vld [vmem:[%s3] sm:$0xff]
        %v408 = vld [vmem:[%s3 + $0x8] sm:$0xff]
        %v409 = vld [vmem:[%s3 + $0x10] sm:$0xff]
        %v410 = vld [vmem:[%s3 + $0x18] sm:$0xff]
        %v411 = vld [vmem:[%s3 + $0x20] sm:$0xff]
        %v412 = vld [vmem:[%s3 + $0x28] sm:$0xff]
        %v413 = vld [vmem:[%s3 + $0x30] sm:$0xff]
        %v414 = vld [vmem:[%s3 + $0x38] sm:$0xff]
        %v415 = vld [vmem:[%s362] sm:$0xff]
        %v416 = vld [vmem:[%s362 + $0x8] sm:$0xff]
        %v417 = vld [vmem:[%s362 + $0x10] sm:$0xff]
        %v418 = vld [vmem:[%s362 + $0x18] sm:$0xff]
        %v419 = vld [vmem:[%s362 + $0x20] sm:$0xff]
        %v420 = vld [vmem:[%s362 + $0x28] sm:$0xff]
        %v421 = vld [vmem:[%s5] sm:$0xff]
        %v422 = vld [vmem:[%s5 + $0x8] sm:$0xff]
        %v423 = vld [vmem:[%s5 + $0x10] sm:$0xff]
        %v424 = vld [vmem:[%s5 + $0x18] sm:$0xff]
        %v425 = vld [vmem:[%s5 + $0x20] sm:$0xff]
        %v426 = vld [vmem:[%s5 + $0x28] sm:$0xff]
        %v427 = vld [vmem:[%s5 + $0x30] sm:$0xff]
        %v428 = vld [vmem:[%s5 + $0x38] sm:$0xff]
        %430 = vset.pattern.permute.xlu0 0
        %431 = vperm.xlu0 %430, %v421
        %v432 = vpop.permute.xlu0 %431
        %435 = vset.pattern.permute.xlu0 0
        %436 = vperm.xlu0 %435, %v422
        %v437 = vpop.permute.xlu0 %436
        %440 = vset.pattern.permute.xlu0 0
        %441 = vperm.xlu0 %440, %v423
        %v442 = vpop.permute.xlu0 %441
        %445 = vset.pattern.permute.xlu0 0
        %446 = vperm.xlu0 %445, %v424
        %v447 = vpop.permute.xlu0 %446
        %450 = vset.pattern.permute.xlu0 0
        %451 = vperm.xlu0 %450, %v425
        %v452 = vpop.permute.xlu0 %451
        %455 = vset.pattern.permute.xlu0 0
        %456 = vperm.xlu0 %455, %v426
        %v457 = vpop.permute.xlu0 %456
        %460 = vset.pattern.permute.xlu0 0
        %461 = vperm.xlu0 %460, %v427
        %v462 = vpop.permute.xlu0 %461
        %465 = vset.pattern.permute.xlu0 0
        %466 = vperm.xlu0 %465, %v428
        %v467 = vpop.permute.xlu0 %466
        %vm469 = vcmask 392192
        %v471 = vsel %vm469, %v407, 0
        %v474 = vsel %vm469, %v408, 0
        %v477 = vsel %vm469, %v409, 0
        %v480 = vsel %vm469, %v410, 0
        %v483 = vsel %vm469, %v411, 0
        %v486 = vsel %vm469, %v412, 0
        %v489 = vsel %vm469, %v413, 0
        %v492 = vsel %vm469, %v414, 0
        %494 = vmatprep.subr.mxu0 0.0
        %495 = vmatpush1.msra.mxu0 %v415
        %496 = vmatprep.subr.mxu0 0.0
        %497 = vmatpush1.msra.mxu0 %v416
        %498 = vmatprep.subr.mxu0 0.0
        %499 = vmatpush1.msra.mxu0 %v417
        %500 = vmatprep.subr.mxu0 0.0
        %501 = vmatpush1.msra.mxu0 %v418
        %502 = vmatprep.subr.mxu0 0.0
        %503 = vmatpush1.msra.mxu0 %v419
        %504 = vmatprep.subr.mxu0 0.0
        %505 = vmatpush1.msra.mxu0 %v420
        %506 = vmatprep.subr.mxu0 0.0
        %507 = vmatpush1.msra.mxu0 0.0
        %508 = vmatprep.subr.mxu0 0.0
        %509 = vmatpush1.msra.mxu0 0.0
        %510 = vmatprep.subr.mxu0 0.0
        %511 = vmatpush1.msra.mxu0 0.0
        %512 = vmatprep.subr.mxu0 0.0
        %513 = vmatpush1.msra.mxu0 0.0
        %514 = vmatprep.subr.mxu0 0.0
        %515 = vmatpush1.msra.mxu0 0.0
        %516 = vmatprep.subr.mxu0 0.0
        %517 = vmatpush1.msra.mxu0 0.0
        %518 = vmatprep.subr.mxu0 0.0
        %519 = vmatpush1.msra.mxu0 0.0
        %520 = vmatprep.subr.mxu0 0.0
        %521 = vmatpush1.msra.mxu0 0.0
        %522 = vmatprep.subr.mxu0 0.0
        %523 = vmatpush1.msra.mxu0 0.0
        %524 = vmatprep.subr.mxu0 0.0
        %525 = vmatpush1.msra.mxu0 0.0
        %526 = vmatprep.subr.mxu0 0.0
        %527 = vmatpush1.msra.mxu0 0.0
        %528 = vmatprep.subr.mxu0 0.0
        %529 = vmatpush1.msra.mxu0 0.0
        %530 = vmatprep.subr.mxu0 0.0
        %531 = vmatpush1.msra.mxu0 0.0
        %532 = vmatprep.subr.mxu0 0.0
        %533 = vmatpush1.msra.mxu0 0.0
        %534 = vmatprep.subr.mxu0 0.0
        %535 = vmatpush1.msra.mxu0 0.0
        %536 = vmatprep.subr.mxu0 0.0
        %537 = vmatpush1.msra.mxu0 0.0
        %538 = vmatprep.subr.mxu0 0.0
        %539 = vmatpush1.msra.mxu0 0.0
        %540 = vmatprep.subr.mxu0 0.0
        %541 = vmatpush1.msra.mxu0 0.0
        %542 = vmatprep.subr.mxu0 0.0
        %543 = vmatpush1.msra.mxu0 0.0
        %544 = vmatprep.subr.mxu0 0.0
        %545 = vmatpush1.msra.mxu0 0.0
        %546 = vmatprep.subr.mxu0 0.0
        %547 = vmatpush1.msra.mxu0 0.0
        %548 = vmatprep.subr.mxu0 0.0
        %549 = vmatpush1.msra.mxu0 0.0
        %550 = vmatprep.subr.mxu0 0.0
        %551 = vmatpush1.msra.mxu0 0.0
        %552 = vmatprep.subr.mxu0 0.0
        %553 = vmatpush1.msra.mxu0 0.0
        %554 = vmatprep.subr.mxu0 0.0
        %555 = vmatpush1.msra.mxu0 0.0
        %556 = vmatprep.subr.mxu0 0.0
        %557 = vmatpush1.msra.mxu0 0.0
        %558 = vmatprep.mubr.f32.mxu0 0.0
        %559 = vmatmul.mubr.f32.gmra.mrb[0].mxu0 %v471
        %v560 = vpop.f32.mrb[0].mxu0
        %v561 = vadd.f32 %v432, %v560
        %v562 = vpop.f32.mrb[0].mxu0
        %563 = vmatprep.mubr.f32.mxu0 0.0
        %564 = vmatmul.mubr.f32.gmra.mrb[0].mxu0 %v474
        %v565 = vpop.f32.mrb[0].mxu0
        %v566 = vadd.f32 %v437, %v565
        %v567 = vpop.f32.mrb[0].mxu0
        %568 = vmatprep.mubr.f32.mxu0 0.0
        %569 = vmatmul.mubr.f32.gmra.mrb[0].mxu0 %v477
        %v570 = vpop.f32.mrb[0].mxu0
        %v571 = vadd.f32 %v442, %v570
        %v572 = vpop.f32.mrb[0].mxu0
        %573 = vmatprep.mubr.f32.mxu0 0.0
        %574 = vmatmul.mubr.f32.gmra.mrb[0].mxu0 %v480
        %v575 = vpop.f32.mrb[0].mxu0
        %v576 = vadd.f32 %v447, %v575
        %v577 = vpop.f32.mrb[0].mxu0
        %578 = vmatprep.mubr.f32.mxu0 0.0
        %579 = vmatmul.mubr.f32.gmra.mrb[0].mxu0 %v483
        %v580 = vpop.f32.mrb[0].mxu0
        %v581 = vadd.f32 %v452, %v580
        %v582 = vpop.f32.mrb[0].mxu0
        %583 = vmatprep.mubr.f32.mxu0 0.0
        %584 = vmatmul.mubr.f32.gmra.mrb[0].mxu0 %v486
        %v585 = vpop.f32.mrb[0].mxu0
        %v586 = vadd.f32 %v457, %v585
        %v587 = vpop.f32.mrb[0].mxu0
        %588 = vmatprep.mubr.f32.mxu0 0.0
        %589 = vmatmul.mubr.f32.gmra.mrb[0].mxu0 %v489
        %v590 = vpop.f32.mrb[0].mxu0
        %v591 = vadd.f32 %v462, %v590
        %v592 = vpop.f32.mrb[0].mxu0
        %593 = vmatprep.mubr.f32.mxu0 0.0
        %594 = vmatmul.mubr.f32.gmra.mrb[0].mxu0 %v492
        %v595 = vpop.f32.mrb[0].mxu0
        %v596 = vadd.f32 %v467, %v595
        %v597 = vpop.f32.mrb[0].mxu0
        %598 = vdwg.mxu0
        %v599 = vld [vmem:[%s4] sm:$0xff]
        %v600 = vld [vmem:[%s4 + $0x8] sm:$0xff]
        %v601 = vld [vmem:[%s4 + $0x10] sm:$0xff]
        %v602 = vld [vmem:[%s4 + $0x18] sm:$0xff]
        %v603 = vld [vmem:[%s369] sm:$0xff]
        %v604 = vld [vmem:[%s369 + $0x8] sm:$0xff]
        %v605 = vld [vmem:[%s369 + $0x10] sm:$0xff]
        %v606 = vld [vmem:[%s369 + $0x18] sm:$0xff]
        %v607 = vld [vmem:[%s6] sm:$0xff]
        %v608 = vld [vmem:[%s6 + $0x8] sm:$0xff]
        %v609 = vld [vmem:[%s6 + $0x10] sm:$0xff]
        %v610 = vld [vmem:[%s6 + $0x18] sm:$0xff]
        %612 = vset.pattern.permute.xlu0 0
        %613 = vperm.xlu0 %612, %v607
        %v614 = vpop.permute.xlu0 %613
        %617 = vset.pattern.permute.xlu0 0
        %618 = vperm.xlu0 %617, %v608
        %v619 = vpop.permute.xlu0 %618
        %622 = vset.pattern.permute.xlu0 0
        %623 = vperm.xlu0 %622, %v609
        %v624 = vpop.permute.xlu0 %623
        %627 = vset.pattern.permute.xlu0 0
        %628 = vperm.xlu0 %627, %v610
        %v629 = vpop.permute.xlu0 %628
        %vm631 = vcmask 261120
        %v633 = vsel %vm631, %v599, 0
        %v636 = vsel %vm631, %v600, 0
        %v639 = vsel %vm631, %v601, 0
        %v642 = vsel %vm631, %v602, 0
        %644 = vmatprep.subr.mxu0 0.0
        %645 = vmatpush1.msra.mxu0 %v603
        %646 = vmatprep.subr.mxu0 0.0
        %647 = vmatpush1.msra.mxu0 %v604
        %648 = vmatprep.subr.mxu0 0.0
        %649 = vmatpush1.msra.mxu0 %v605
        %650 = vmatprep.subr.mxu0 0.0
        %651 = vmatpush1.msra.mxu0 %v606
        %652 = vmatprep.subr.mxu0 0.0
        %653 = vmatpush1.msra.mxu0 0.0
        %654 = vmatprep.subr.mxu0 0.0
        %655 = vmatpush1.msra.mxu0 0.0
        %656 = vmatprep.subr.mxu0 0.0
        %657 = vmatpush1.msra.mxu0 0.0
        %658 = vmatprep.subr.mxu0 0.0
        %659 = vmatpush1.msra.mxu0 0.0
        %660 = vmatprep.subr.mxu0 0.0
        %661 = vmatpush1.msra.mxu0 0.0
        %662 = vmatprep.subr.mxu0 0.0
        %663 = vmatpush1.msra.mxu0 0.0
        %664 = vmatprep.subr.mxu0 0.0
        %665 = vmatpush1.msra.mxu0 0.0
        %666 = vmatprep.subr.mxu0 0.0
        %667 = vmatpush1.msra.mxu0 0.0
        %668 = vmatprep.subr.mxu0 0.0
        %669 = vmatpush1.msra.mxu0 0.0
        %670 = vmatprep.subr.mxu0 0.0
        %671 = vmatpush1.msra.mxu0 0.0
        %672 = vmatprep.subr.mxu0 0.0
        %673 = vmatpush1.msra.mxu0 0.0
        %674 = vmatprep.subr.mxu0 0.0
        %675 = vmatpush1.msra.mxu0 0.0
        %676 = vmatprep.subr.mxu0 0.0
        %677 = vmatpush1.msra.mxu0 0.0
        %678 = vmatprep.subr.mxu0 0.0
        %679 = vmatpush1.msra.mxu0 0.0
        %680 = vmatprep.subr.mxu0 0.0
        %681 = vmatpush1.msra.mxu0 0.0
        %682 = vmatprep.subr.mxu0 0.0
        %683 = vmatpush1.msra.mxu0 0.0
        %684 = vmatprep.subr.mxu0 0.0
        %685 = vmatpush1.msra.mxu0 0.0
        %686 = vmatprep.subr.mxu0 0.0
        %687 = vmatpush1.msra.mxu0 0.0
        %688 = vmatprep.subr.mxu0 0.0
        %689 = vmatpush1.msra.mxu0 0.0
        %690 = vmatprep.subr.mxu0 0.0
        %691 = vmatpush1.msra.mxu0 0.0
        %692 = vmatprep.subr.mxu0 0.0
        %693 = vmatpush1.msra.mxu0 0.0
        %694 = vmatprep.subr.mxu0 0.0
        %695 = vmatpush1.msra.mxu0 0.0
        %696 = vmatprep.subr.mxu0 0.0
        %697 = vmatpush1.msra.mxu0 0.0
        %698 = vmatprep.subr.mxu0 0.0
        %699 = vmatpush1.msra.mxu0 0.0
        %700 = vmatprep.subr.mxu0 0.0
        %701 = vmatpush1.msra.mxu0 0.0
        %702 = vmatprep.subr.mxu0 0.0
        %703 = vmatpush1.msra.mxu0 0.0
        %704 = vmatprep.subr.mxu0 0.0
        %705 = vmatpush1.msra.mxu0 0.0
        %706 = vmatprep.subr.mxu0 0.0
        %707 = vmatpush1.msra.mxu0 0.0
        %708 = vmatprep.mubr.f32.mxu0 0.0
        %709 = vmatmul.mubr.f32.gmra.mrb[0].mxu0 %v633
        %v710 = vpop.f32.mrb[0].mxu0
        %v711 = vadd.f32 %v614, %v710
        %v712 = vpop.f32.mrb[0].mxu0
        %713 = vmatprep.mubr.f32.mxu0 0.0
        %714 = vmatmul.mubr.f32.gmra.mrb[0].mxu0 %v636
        %v715 = vpop.f32.mrb[0].mxu0
        %v716 = vadd.f32 %v619, %v715
        %v717 = vpop.f32.mrb[0].mxu0
        %718 = vmatprep.mubr.f32.mxu0 0.0
        %719 = vmatmul.mubr.f32.gmra.mrb[0].mxu0 %v639
        %v720 = vpop.f32.mrb[0].mxu0
        %v721 = vadd.f32 %v624, %v720
        %v722 = vpop.f32.mrb[0].mxu0
        %723 = vmatprep.mubr.f32.mxu0 0.0
        %724 = vmatmul.mubr.f32.gmra.mrb[0].mxu0 %v642
        %v725 = vpop.f32.mrb[0].mxu0
        %v726 = vadd.f32 %v629, %v725
        %v727 = vpop.f32.mrb[0].mxu0
        %728 = vdwg.mxu0
        %v729 = vxor.u32 %v561, 2147483648
        %v730 = vxor.u32 %v566, 2147483648
        %v731 = vxor.u32 %v571, 2147483648
        %v732 = vxor.u32 %v576, 2147483648
        %v733 = vmul.f32 %v729, 1.442695
        %v734 = vpow.pop %v733
        %v735 = vmul.f32 %v730, 1.442695
        %v736 = vpow.pop %v735
        %v737 = vmul.f32 %v731, 1.442695
        %v738 = vpow.pop %v737
        %v739 = vmul.f32 %v732, 1.442695
        %v740 = vpow.pop %v739
        %v741 = vadd.f32 %v734, 1.0
        %v742 = vadd.f32 %v736, 1.0
        %v743 = vadd.f32 %v738, 1.0
        %v744 = vadd.f32 %v740, 1.0
        %v745 = vrcp.pop %v741
        %v746 = vmul.f32 1.0, %v745
        %v747 = vrcp.pop %v742
        %v748 = vmul.f32 1.0, %v747
        %v749 = vrcp.pop %v743
        %v750 = vmul.f32 1.0, %v749
        %v751 = vrcp.pop %v744
        %v752 = vmul.f32 1.0, %v751
        %v753 = vmul.f32 %v746, %v711
        %v754 = vmul.f32 %v748, %v716
        %v755 = vmul.f32 %v750, %v721
        %v756 = vmul.f32 %v752, %v726
        %v757 = vadd.f32 %v581, %v753
        %v758 = vadd.f32 %v586, %v754
        %v759 = vadd.f32 %v591, %v755
        %v760 = vadd.f32 %v596, %v756
        %v761 = vtanh.pop %v757
        %v762 = vtanh.pop %v758
        %v763 = vtanh.pop %v759
        %v764 = vtanh.pop %v760
        %v765 = vld [vmem:[%s406] sm:$0x1]
        %v766 = vsub.f32 %v761, %v603
        %v767 = vsub.f32 %v762, %v604
        %v768 = vsub.f32 %v763, %v605
        %v769 = vsub.f32 %v764, %v606
        %v771 = vlaneseq
        %v772 = vshrl.u32 %v771, 7
        %v773 = vsub.s32 0, %v772
        %v774 = vrot.slane %v765, %v773
        %v776 = vmul.f32 %v774, %v766
        %v777 = vmul.f32 %v774, %v767
        %v778 = vmul.f32 %v774, %v768
        %v779 = vmul.f32 %v774, %v769
        %v780 = vadd.f32 %v603, %v776
        %v781 = vadd.f32 %v604, %v777
        %v782 = vadd.f32 %v605, %v778
        %v783 = vadd.f32 %v606, %v779
        %784 = vst [vmem:[%s403] sm:$0xff] %v780
        %785 = vst [vmem:[%s403 + $0x8] sm:$0xff] %v781
        %786 = vst [vmem:[%s403 + $0x10] sm:$0xff] %v782
        %787 = vst [vmem:[%s403 + $0x18] sm:$0xff] %v783
        %s788 = sand.u32 %s188, 1
        %s789 = sand.u32 %s188, 1
        %s790 = smul.addr %s789, 32
        %s791 = scalar_lea.vmem [#allocation4], %s790
        // Predicated region
        $region125: #{agru_cell.1} parent=115 // pred_check
          %p792 = pneg %p198
        $region126: #{agru_cell.1} parent=115 // pred_check_branch
          %794 = sbr.rel (%p792) target = $region128
        $region127: #{agru_cell.1} parent=115 // pred_region
          %s795 = smul.addr %s18, 8
          %s796 = scalar_lea.vmem %s7, %s795
          // Predicated region
          $region129: #{agru_cell.1} parent=127 // pred_check
            _
          $region130: #{agru_cell.1} parent=127 // pred_check_branch
            %798 = sbr.rel (0) target = $region132
          $region131: #{agru_cell.1} parent=127 // pred_region
            // Predicated region
            $region133: #{agru_cell.1} parent=131 // pred_check
              _
            $region134: #{agru_cell.1} parent=131 // pred_check_branch
              %800 = sbr.rel (0) target = $region136
            $region135: #{agru_cell.1} parent=131 // pred_region
              // Predicated region
              $region148: #{agru_cell.1} parent=135 // pred_check
                _
              $region149: #{agru_cell.1} parent=135 // pred_check_branch
                %821 = sbr.rel (0) target = $region151
              $region150: #{agru_cell.1} parent=135 // pred_region
                loop: start=0, step=1, limit=1
                $region152: #{agru_cell.1} parent=150 // loop_pre_header
                  _
                $region153: #{agru_cell.1} parent=150 // loop_header
                  %s823 = sphi 0, %s827
                  %p824 = scmp.ge.s32.totalorder %s823, 1
                  %s828 = sphi %s791, %s791
                  %s829 = sphi %s796, %s796
                $region154: #{agru_cell.1} parent=150 // loop_header_branch
                  %826 = sbr.rel (%p824) target = $region158
                $region155: #{agru_cell.1} parent=150 // loop_body
                  %v830 = vld [vmem:[%s828] sm:$0xff]
                  %831 = vst [vmem:[%s829] sm:$0xff] %v830
                  %v832 = vld [vmem:[%s828 + $0x8] sm:$0xff]
                  %833 = vst [vmem:[%s829 + $0x10] sm:$0xff] %v832
                  %v834 = vld [vmem:[%s828 + $0x10] sm:$0xff]
                  %835 = vst [vmem:[%s829 + $0x20] sm:$0xff] %v834
                  %v836 = vld [vmem:[%s828 + $0x18] sm:$0xff]
                  %837 = vst [vmem:[%s829 + $0x30] sm:$0xff] %v836
                $region156: #{agru_cell.1} parent=150 // loop_footer
                  %s827 = sadd.s32 1, %s823
                $region157: #{agru_cell.1} parent=150 // loop_footer_branch
                  %822 = sbr.rel target = $region153
                $region158: #{agru_cell.1} parent=150 // loop_exit
                  _
              $region151: #{agru_cell.1} parent=135 // pred_fallthru
                _
              // Predicated region
              $region159: #{agru_cell.1} parent=135 // pred_check
                _
              $region160: #{agru_cell.1} parent=135 // pred_check_branch
                %839 = sbr.rel target = $region162
              $region161: #{agru_cell.1} parent=135 // pred_region
                _
              $region162: #{agru_cell.1} parent=135 // pred_fallthru
                _
            $region136: #{agru_cell.1} parent=131 // pred_fallthru
              _
            // Predicated region
            $region137: #{agru_cell.1} parent=131 // pred_check
              _
            $region138: #{agru_cell.1} parent=131 // pred_check_branch
              %802 = sbr.rel target = $region140
            $region139: #{agru_cell.1} parent=131 // pred_region
              loop: start=0, step=1, limit=1
              $region141: #{agru_cell.1} parent=139 // loop_pre_header
                _
              $region142: #{agru_cell.1} parent=139 // loop_header
                %s805 = sphi 0, %s809
                %p806 = scmp.ge.s32.totalorder %s805, 1
                %s810 = sphi %s791, %s791
                %s811 = sphi %s796, %s796
              $region143: #{agru_cell.1} parent=139 // loop_header_branch
                %808 = sbr.rel (%p806) target = $region147
              $region144: #{agru_cell.1} parent=139 // loop_body
                %v812 = vld [vmem:[%s810] sm:$0xff]
                %813 = vst [vmem:[%s811] sm:$0xff] %v812
                %v814 = vld [vmem:[%s810 + $0x8] sm:$0xff]
                %815 = vst [vmem:[%s811 + $0x10] sm:$0xff] %v814
                %v816 = vld [vmem:[%s810 + $0x10] sm:$0xff]
                %817 = vst [vmem:[%s811 + $0x20] sm:$0xff] %v816
                %v818 = vld [vmem:[%s810 + $0x18] sm:$0xff]
                %819 = vst [vmem:[%s811 + $0x30] sm:$0xff] %v818
              $region145: #{agru_cell.1} parent=139 // loop_footer
                %s809 = sadd.s32 1, %s805
              $region146: #{agru_cell.1} parent=139 // loop_footer_branch
                %804 = sbr.rel target = $region142
              $region147: #{agru_cell.1} parent=139 // loop_exit
                _
            $region140: #{agru_cell.1} parent=131 // pred_fallthru
              _
          $region132: #{agru_cell.1} parent=127 // pred_fallthru
            _
          %840 = vnop
        $region128: #{agru_cell.1} parent=115 // pred_fallthru
          _
      $region116: #{agru_cell.1} parent=5 // pred_fallthru
        _
      %p841 = scmp.le.s32.totalorder 2, %s13
      // Predicated region
      $region163: #{agru_cell.1} parent=5 // pred_check
        %p842 = pneg %p841
      $region164: #{agru_cell.1} parent=5 // pred_check_branch
        %844 = sbr.rel (%p842) target = $region166
      $region165: #{agru_cell.1} parent=5 // pred_region
        %s845 = ssub.s32 %s13, 2
        // Predicated region
        $region167: #{agru_cell.1} parent=165 // pred_check
          %p846 = pneg %p204
        $region168: #{agru_cell.1} parent=165 // pred_check_branch
          %848 = sbr.rel (%p846) target = $region170
        $region169: #{agru_cell.1} parent=165 // pred_region
          %s849 = sand.u32 %s189, 1
          %s850 = sand.u32 %s189, 1
          %s851 = smul.addr %s850, 32
          %s852 = scalar_lea.vmem [#allocation4], %s851
        $region170: #{agru_cell.1} parent=165 // pred_fallthru
          _
      $region166: #{agru_cell.1} parent=5 // pred_fallthru
        _
    $region6: #{agru_cell.1} parent=1 // loop_footer
      %s17 = sadd.s32 1, %s13
    $region7: #{agru_cell.1} parent=1 // loop_footer_branch
      %12 = sbr.rel target = $region3
    $region8: #{agru_cell.1} parent=1 // loop_exit
      _

</llo_original>
